<compile_context>
chip_gen: v5e
topology: v5e:2x2
jax: 0.10.0
libtpu: 0.0.40
codegen_flags: <defaults>
</compile_context>

<pallas_src>
import functools

import jax
import jax.numpy as jnp
from jax.experimental import pallas as pl
from jax.experimental.pallas import tpu as pltpu

C_IN = 2   # torch.cat([image, label256], dim=1), 1 channel each
K = 3      # 3x3x3 kernel, padding=1, bias=False


def _widx(c, kd, kh, kw):
    # flat index into the (C_IN, K, K, K) weight tensor (row-major)
    return ((c * K + kd) * K + kh) * K + kw


def _exnet_kernel(wb_ref, mask_ref, img_ref, lbl_ref, halo_ref, o_ref, *, w_size):
    # wb_ref   : SMEM f32[55]       BN-scaled conv weights (54) + folded BN bias (1)
    # mask_ref : VMEM f32[9, HW]    (kh,kw) boundary-validity masks (1 inside, 0 outside)
    # img_ref  : VMEM [1, Dt, HW]   depth tile of channel 0 (image)
    # lbl_ref  : VMEM [1, Dt, HW]   depth tile of channel 1 (label256)
    # halo_ref : VMEM [1, 1, 4, HW] packed single-plane depth halos:
    #                               rows = img_prev, img_next, lbl_prev, lbl_next
    #                               (zero planes at the volume edge)
    # o_ref    : VMEM [1, Dt, HW]
    Dt = img_ref.shape[1]
    HW = img_ref.shape[2]

    x_img = img_ref[0].astype(jnp.float32)        # (Dt, HW), loaded once
    x_lbl = lbl_ref[0].astype(jnp.float32)        # (Dt, HW)
    halo = halo_ref[0, 0].astype(jnp.float32)     # (4, HW)

    drow = jax.lax.broadcasted_iota(jnp.int32, (Dt, 1), 0)
    first = drow == 0
    last = drow == Dt - 1

    def depth_shift(x, prev_p, next_p, kd):
        # slab[p] = source plane (p + kd - 1); tile-edge planes come from the halo.
        if kd == 0:
            return jnp.where(first, prev_p, pltpu.roll(x, shift=1, axis=0))
        if kd == 1:
            return x
        return jnp.where(last, next_p, pltpu.roll(x, shift=Dt - 1, axis=0))

    # 6 depth-shifted slabs (2 channels x 3 kd) -> only 4 sublane rolls total.
    slabs = (
        tuple(depth_shift(x_img, halo[0:1], halo[1:2], kd) for kd in range(K)),
        tuple(depth_shift(x_lbl, halo[2:3], halo[3:4], kd) for kd in range(K)),
    )

    # For each of the 9 (kh,kw) taps: combine channels/depth with SCALAR weights
    # first, then ONE lane roll and ONE per-lane boundary mask.  Independent
    # per-kh accumulators break the serial f32 add chain.
    accs = []
    for kh in range(K):
        acc_h = None
        for kw in range(K):
            comb_img = (slabs[0][0] * wb_ref[_widx(0, 0, kh, kw)]
                        + slabs[0][1] * wb_ref[_widx(0, 1, kh, kw)]
                        + slabs[0][2] * wb_ref[_widx(0, 2, kh, kw)])
            comb_lbl = (slabs[1][0] * wb_ref[_widx(1, 0, kh, kw)]
                        + slabs[1][1] * wb_ref[_widx(1, 1, kh, kw)]
                        + slabs[1][2] * wb_ref[_widx(1, 2, kh, kw)])
            comb = comb_img + comb_lbl
            s = (kh - 1) * w_size + (kw - 1)          # flat (H,W) shift of this tap
            if s != 0:
                # wrap-around lanes are zeroed by the mask, so a plain roll is exact
                comb = pltpu.roll(comb, shift=(-s) % HW, axis=1)
            if not (kh == 1 and kw == 1):             # center tap needs no mask
                m = mask_ref[kh * K + kw: kh * K + kw + 1, :]   # (1, HW)
                comb = comb * m
            acc_h = comb if acc_h is None else acc_h + comb
        accs.append(acc_h)

    bias = wb_ref[C_IN * K * K * K]                   # folded BatchNorm bias
    acc = (accs[0] + accs[1]) + (accs[2] + bias)
    y = jnp.maximum(acc, 0.0)                         # ReLU
    o_ref[0] = jax.nn.sigmoid(y).astype(o_ref.dtype)  # Sigmoid (EUP)


def _pick_d_tile(D, want=32):
    """Largest divisor of D that is <= want and a multiple of 8 (or D itself)."""
    best = 1
    for t in range(1, min(D, want) + 1):
        if D % t == 0 and (t % 8 == 0 or t == D):
            best = t
    return best


@functools.partial(jax.jit, static_argnames=("d_tile",))
def exnet_forward(image, label256, conv_w, bn_gamma, bn_beta,
                  bn_mean, bn_var, *, d_tile=None):
    """image, label256: [N, 1, D, H, W] (NCDHW like PyTorch). Returns [N,1,D,H,W]."""
    N, _, D, H, W = image.shape
    HW = H * W
    if d_tile is None:
        d_tile = _pick_d_tile(D)
    d_tile = min(d_tile, D)
    assert D % d_tile == 0, "D must be divisible by d_tile"
    assert d_tile == D or d_tile % 8 == 0, "d_tile should be a multiple of 8 (or == D)"
    # TODO(synk): for bf16 activations on v7x prefer d_tile % 16 == 0 (sublane packing).
    n_dt = D // d_tile

    # ---- free re-layouts: lane-dense (D, H*W); no concat / no spatial pad in HBM ----
    img = image.reshape(N, D, HW)
    lbl = label256.reshape(N, D, HW)

    # packed single-plane depth halos per tile: (N, n_dt, 4, HW) -> one DMA per step
    def plane_halos(x):
        zero = jnp.zeros((N, 1, HW), x.dtype)
        prev = jnp.concatenate(
            [zero, x[:, d_tile - 1::d_tile, :][:, :n_dt - 1]], axis=1)
        nxt = jnp.concatenate([x[:, d_tile::d_tile, :], zero], axis=1)
        return prev, nxt

    img_prev, img_next = plane_halos(img)
    lbl_prev, lbl_next = plane_halos(lbl)
    halos = jnp.stack([img_prev, img_next, lbl_prev, lbl_next], axis=2)

    # ---- fold eval-mode BatchNorm into the conv weights / bias (scalars in SMEM) ----
    # TODO(synk): PyTorch BatchNorm3d in train mode uses batch statistics;
    # eval-mode running stats are folded here.
    eps = 1e-5
    scale = (bn_gamma / jnp.sqrt(bn_var + eps)).astype(jnp.float32)    # (1,)
    bias = (bn_beta - bn_mean * scale).astype(jnp.float32)             # (1,)
    w_scaled = (conv_w[0].astype(jnp.float32) * scale[0]).reshape(C_IN * K * K * K)
    wb = jnp.concatenate([w_scaled, bias])                             # f32[55] -> SMEM

    # (kh,kw) boundary validity masks — tiny f32[9, HW] (replaces old f32[54, HW])
    hw = jnp.arange(HW, dtype=jnp.int32)
    h_idx = hw // W
    w_idx = hw % W
    kh_off = jnp.arange(K).reshape(K, 1, 1) - 1
    kw_off = jnp.arange(K).reshape(1, K, 1) - 1
    hh = h_idx.reshape(1, 1, HW) + kh_off
    ww = w_idx.reshape(1, 1, HW) + kw_off
    masks = ((hh >= 0) & (hh < H) & (ww >= 0) & (ww < W)).astype(jnp.float32)
    masks = masks.reshape(K * K, HW)

    out_dtype = image.dtype   # bf16 in -> bf16 out (f32 accumulation in-kernel)

    # VMEM budget: double-buffered input/output tiles + resident masks + f32
    # intermediates.  Capped at 40 MiB (safe headroom on v7x's 64 MiB physical);
    # raise the cap on v5e/v6e (128 MiB) if you push d_tile much larger.
    in_item = jnp.dtype(image.dtype).itemsize
    out_item = jnp.dtype(out_dtype).itemsize
    tile_bytes = (2 * d_tile + 4) * HW * in_item
    out_bytes = d_tile * HW * out_item
    interm_bytes = 12 * d_tile * HW * 4
    vmem_limit = int(min(40 * 2 ** 20,
                         max(16 * 2 ** 20,
                             2 * (tile_bytes + out_bytes) + K * K * HW * 4
                             + interm_bytes + 2 * 2 ** 20)))

    out = pl.pallas_call(
        functools.partial(_exnet_kernel, w_size=W),
        out_shape=jax.ShapeDtypeStruct((N, D, HW), out_dtype),
        grid_spec=pltpu.PrefetchScalarGridSpec(
            num_scalar_prefetch=0,
            grid=(N, n_dt),   # both parallel; keep N * n_dt >= 2 on v7x (2 TCs)
            in_specs=[
                pl.BlockSpec(memory_space=pltpu.MemorySpace.SMEM),       # wb scalars
                pl.BlockSpec((K * K, HW), lambda n, t: (0, 0)),          # masks (resident)
                pl.BlockSpec((1, d_tile, HW), lambda n, t: (n, t, 0)),   # image tile
                pl.BlockSpec((1, d_tile, HW), lambda n, t: (n, t, 0)),   # label tile
                pl.BlockSpec((1, 1, 4, HW), lambda n, t: (n, t, 0, 0)),  # packed halos
            ],
            out_specs=pl.BlockSpec((1, d_tile, HW), lambda n, t: (n, t, 0)),
        ),
        compiler_params=pltpu.CompilerParams(
            dimension_semantics=("parallel", "parallel"),
            vmem_limit_bytes=vmem_limit),
    )(wb, masks, img, lbl, halos)

    return out.reshape(N, 1, D, H, W)


def _reference(image, label256, conv_w, bn_gamma, bn_beta, bn_mean, bn_var):
    """Pure-JAX reference (lax conv) for correctness checking."""
    x = jnp.concatenate([image, label256], axis=1)
    y = jax.lax.conv_general_dilated(
        x, conv_w, window_strides=(1, 1, 1), padding=((1, 1), (1, 1), (1, 1)),
        dimension_numbers=("NCDHW", "OIDHW", "NCDHW"))
    eps = 1e-5
    y = (y - bn_mean.reshape(1, -1, 1, 1, 1)) / jnp.sqrt(
        bn_var.reshape(1, -1, 1, 1, 1) + eps)
    y = y * bn_gamma.reshape(1, -1, 1, 1, 1) + bn_beta.reshape(1, -1, 1, 1, 1)
    y = jnp.maximum(y, 0.0)
    return jax.nn.sigmoid(y)


if __name__ == "__main__":
    key = jax.random.PRNGKey(0)
    k_img, k_lbl, k_w = jax.random.split(key, 3)

    # Small shapes; D=16 with d_tile=8 exercises the depth-tiled halo path,
    # H*W=256 keeps the lane axis a multiple of 128.
    N, D, H, W = 2, 16, 16, 16
    image = jax.random.normal(k_img, (N, 1, D, H, W), dtype=jnp.float32)
    label256 = jax.random.normal(k_lbl, (N, 1, D, H, W), dtype=jnp.float32)

    fan_in = C_IN * K * K * K
    conv_w = (jax.random.normal(k_w, (1, C_IN, K, K, K), dtype=jnp.float32)
              * jnp.sqrt(2.0 / fan_in))
    bn_gamma = jnp.full((1,), 1.3, jnp.float32)
    bn_beta = jnp.full((1,), 0.2, jnp.float32)
    bn_mean = jnp.full((1,), 0.1, jnp.float32)   # eval-mode running stats
    bn_var = jnp.full((1,), 0.9, jnp.float32)

    ref = _reference(image, label256, conv_w, bn_gamma, bn_beta, bn_mean, bn_var)

    # depth-tiled path (halo planes used)
    out_tiled = jax.block_until_ready(
        exnet_forward(image, label256, conv_w, bn_gamma, bn_beta,
                      bn_mean, bn_var, d_tile=8))
    # default tiling (single depth tile at this size)
    out_full = jax.block_until_ready(
        exnet_forward(image, label256, conv_w, bn_gamma, bn_beta,
                      bn_mean, bn_var))

    assert out_tiled.shape == (N, 1, D, H, W)
    assert jnp.allclose(out_tiled, ref, atol=2e-5, rtol=2e-5), (
        float(jnp.max(jnp.abs(out_tiled - ref))))
    assert jnp.allclose(out_full, ref, atol=2e-5, rtol=2e-5), (
        float(jnp.max(jnp.abs(out_full - ref))))
    print("KERNEL_OK")
</pallas_src>

<mosaic_0001>
module attributes {stable_mosaic.version = 11 : i64} {
  func.func @_exnet_kernel(%arg0: i32, %arg1: i32, %arg2: memref<55xf32, #tpu.memory_space<smem>>, %arg3: memref<9x256xf32, #tpu.memory_space<vmem>>, %arg4: memref<1x8x256xf32, #tpu.memory_space<vmem>>, %arg5: memref<1x8x256xf32, #tpu.memory_space<vmem>>, %arg6: memref<1x1x4x256xf32, #tpu.memory_space<vmem>>, %arg7: memref<1x8x256xf32, #tpu.memory_space<vmem>>) attributes {dimension_semantics = [#tpu.dimension_semantics<parallel>, #tpu.dimension_semantics<parallel>], iteration_bounds = array<i64: 2, 2>, scalar_prefetch = 0 : i64, scratch_operands = 0 : i64, tpu.core_type = #tpu.core_type<tc>, window_params = [{transform_indices = @transform_0, window_bounds = array<i64: 55>}, {pipeline_mode = #tpu.pipeline_mode<synchronous>, transform_indices = @transform_1, window_bounds = array<i64: 9, 256>}, {transform_indices = @transform_2, window_bounds = array<i64: 1, 8, 256>}, {transform_indices = @transform_3, window_bounds = array<i64: 1, 8, 256>}, {transform_indices = @transform_4, window_bounds = array<i64: 1, 1, 4, 256>}, {transform_indices = @transform_5, window_bounds = array<i64: 1, 8, 256>}]} {
    %c0 = arith.constant 0 : index
    %c0_0 = arith.constant 0 : index
    %c0_1 = arith.constant 0 : index
    %0 = vector.load %arg4[%c0, %c0_0, %c0_1] : memref<1x8x256xf32, #tpu.memory_space<vmem>>, vector<1x8x256xf32>
    %1 = vector.shape_cast %0 : vector<1x8x256xf32> to vector<8x256xf32>
    %c0_2 = arith.constant 0 : index
    %c0_3 = arith.constant 0 : index
    %c0_4 = arith.constant 0 : index
    %2 = vector.load %arg5[%c0_2, %c0_3, %c0_4] : memref<1x8x256xf32, #tpu.memory_space<vmem>>, vector<1x8x256xf32>
    %3 = vector.shape_cast %2 : vector<1x8x256xf32> to vector<8x256xf32>
    %c0_5 = arith.constant 0 : index
    %c0_6 = arith.constant 0 : index
    %c0_7 = arith.constant 0 : index
    %c0_8 = arith.constant 0 : index
    %4 = vector.load %arg6[%c0_5, %c0_6, %c0_7, %c0_8] : memref<1x1x4x256xf32, #tpu.memory_space<vmem>>, vector<1x1x4x256xf32>
    %5 = vector.shape_cast %4 : vector<1x1x4x256xf32> to vector<4x256xf32>
    %6 = tpu.iota {dimensions = array<i32: 0>} : vector<8x1xi32>
    %c0_i32 = arith.constant 0 : i32
    %7 = vector.broadcast %c0_i32 : i32 to vector<8x1xi32>
    %8 = arith.cmpi eq, %6, %7 : vector<8x1xi32>
    %c7_i32 = arith.constant 7 : i32
    %9 = vector.broadcast %c7_i32 : i32 to vector<8x1xi32>
    %10 = arith.cmpi eq, %6, %9 : vector<8x1xi32>
    %11 = vector.extract_strided_slice %5 {offsets = [0, 0], sizes = [1, 256], strides = [1, 1]} : vector<4x256xf32> to vector<1x256xf32>
    %c1_i32 = arith.constant 1 : i32
    %12 = tpu.dynamic_rotate %1 by %c1_i32 dim 0 : vector<8x256xf32>, i32 -> vector<8x256xf32>
    %13 = vector.shape_cast %8 : vector<8x1xi1> to vector<8x1xi1>
    %14 = vector.broadcast %13 : vector<8x1xi1> to vector<8x256xi1>
    %15 = vector.shape_cast %11 : vector<1x256xf32> to vector<1x256xf32>
    %16 = vector.broadcast %15 : vector<1x256xf32> to vector<8x256xf32>
    %17 = arith.select %14, %16, %12 : vector<8x256xi1>, vector<8x256xf32>
    %18 = vector.extract_strided_slice %5 {offsets = [1, 0], sizes = [1, 256], strides = [1, 1]} : vector<4x256xf32> to vector<1x256xf32>
    %c7_i32_9 = arith.constant 7 : i32
    %19 = tpu.dynamic_rotate %1 by %c7_i32_9 dim 0 : vector<8x256xf32>, i32 -> vector<8x256xf32>
    %20 = vector.shape_cast %10 : vector<8x1xi1> to vector<8x1xi1>
    %21 = vector.broadcast %20 : vector<8x1xi1> to vector<8x256xi1>
    %22 = vector.shape_cast %18 : vector<1x256xf32> to vector<1x256xf32>
    %23 = vector.broadcast %22 : vector<1x256xf32> to vector<8x256xf32>
    %24 = arith.select %21, %23, %19 : vector<8x256xi1>, vector<8x256xf32>
    %25 = vector.extract_strided_slice %5 {offsets = [2, 0], sizes = [1, 256], strides = [1, 1]} : vector<4x256xf32> to vector<1x256xf32>
    %c1_i32_10 = arith.constant 1 : i32
    %26 = tpu.dynamic_rotate %3 by %c1_i32_10 dim 0 : vector<8x256xf32>, i32 -> vector<8x256xf32>
    %27 = vector.shape_cast %8 : vector<8x1xi1> to vector<8x1xi1>
    %28 = vector.broadcast %27 : vector<8x1xi1> to vector<8x256xi1>
    %29 = vector.shape_cast %25 : vector<1x256xf32> to vector<1x256xf32>
    %30 = vector.broadcast %29 : vector<1x256xf32> to vector<8x256xf32>
    %31 = arith.select %28, %30, %26 : vector<8x256xi1>, vector<8x256xf32>
    %32 = vector.extract_strided_slice %5 {offsets = [3, 0], sizes = [1, 256], strides = [1, 1]} : vector<4x256xf32> to vector<1x256xf32>
    %c7_i32_11 = arith.constant 7 : i32
    %33 = tpu.dynamic_rotate %3 by %c7_i32_11 dim 0 : vector<8x256xf32>, i32 -> vector<8x256xf32>
    %34 = vector.shape_cast %10 : vector<8x1xi1> to vector<8x1xi1>
    %35 = vector.broadcast %34 : vector<8x1xi1> to vector<8x256xi1>
    %36 = vector.shape_cast %32 : vector<1x256xf32> to vector<1x256xf32>
    %37 = vector.broadcast %36 : vector<1x256xf32> to vector<8x256xf32>
    %38 = arith.select %35, %37, %33 : vector<8x256xi1>, vector<8x256xf32>
    %c0_12 = arith.constant 0 : index
    %39 = memref.load %arg2[%c0_12] : memref<55xf32, #tpu.memory_space<smem>>
    %40 = vector.broadcast %39 : f32 to vector<8x256xf32>
    %41 = arith.mulf %17, %40 : vector<8x256xf32>
    %c9 = arith.constant 9 : index
    %42 = memref.load %arg2[%c9] : memref<55xf32, #tpu.memory_space<smem>>
    %43 = vector.broadcast %42 : f32 to vector<8x256xf32>
    %44 = arith.mulf %1, %43 : vector<8x256xf32>
    %45 = arith.addf %41, %44 : vector<8x256xf32>
    %c18 = arith.constant 18 : index
    %46 = memref.load %arg2[%c18] : memref<55xf32, #tpu.memory_space<smem>>
    %47 = vector.broadcast %46 : f32 to vector<8x256xf32>
    %48 = arith.mulf %24, %47 : vector<8x256xf32>
    %49 = arith.addf %45, %48 : vector<8x256xf32>
    %c27 = arith.constant 27 : index
    %50 = memref.load %arg2[%c27] : memref<55xf32, #tpu.memory_space<smem>>
    %51 = vector.broadcast %50 : f32 to vector<8x256xf32>
    %52 = arith.mulf %31, %51 : vector<8x256xf32>
    %c36 = arith.constant 36 : index
    %53 = memref.load %arg2[%c36] : memref<55xf32, #tpu.memory_space<smem>>
    %54 = vector.broadcast %53 : f32 to vector<8x256xf32>
    %55 = arith.mulf %3, %54 : vector<8x256xf32>
    %56 = arith.addf %52, %55 : vector<8x256xf32>
    %c45 = arith.constant 45 : index
    %57 = memref.load %arg2[%c45] : memref<55xf32, #tpu.memory_space<smem>>
    %58 = vector.broadcast %57 : f32 to vector<8x256xf32>
    %59 = arith.mulf %38, %58 : vector<8x256xf32>
    %60 = arith.addf %56, %59 : vector<8x256xf32>
    %61 = arith.addf %49, %60 : vector<8x256xf32>
    %c17_i32 = arith.constant 17 : i32
    %62 = tpu.dynamic_rotate %61 by %c17_i32 dim 1 : vector<8x256xf32>, i32 -> vector<8x256xf32>
    %c0_13 = arith.constant 0 : index
    %c0_14 = arith.constant 0 : index
    %63 = vector.load %arg3[%c0_13, %c0_14] : memref<9x256xf32, #tpu.memory_space<vmem>>, vector<1x256xf32>
    %64 = vector.broadcast %63 : vector<1x256xf32> to vector<8x256xf32>
    %65 = arith.mulf %62, %64 : vector<8x256xf32>
    %c1 = arith.constant 1 : index
    %66 = memref.load %arg2[%c1] : memref<55xf32, #tpu.memory_space<smem>>
    %67 = vector.broadcast %66 : f32 to vector<8x256xf32>
    %68 = arith.mulf %17, %67 : vector<8x256xf32>
    %c10 = arith.constant 10 : index
    %69 = memref.load %arg2[%c10] : memref<55xf32, #tpu.memory_space<smem>>
    %70 = vector.broadcast %69 : f32 to vector<8x256xf32>
    %71 = arith.mulf %1, %70 : vector<8x256xf32>
    %72 = arith.addf %68, %71 : vector<8x256xf32>
    %c19 = arith.constant 19 : index
    %73 = memref.load %arg2[%c19] : memref<55xf32, #tpu.memory_space<smem>>
    %74 = vector.broadcast %73 : f32 to vector<8x256xf32>
    %75 = arith.mulf %24, %74 : vector<8x256xf32>
    %76 = arith.addf %72, %75 : vector<8x256xf32>
    %c28 = arith.constant 28 : index
    %77 = memref.load %arg2[%c28] : memref<55xf32, #tpu.memory_space<smem>>
    %78 = vector.broadcast %77 : f32 to vector<8x256xf32>
    %79 = arith.mulf %31, %78 : vector<8x256xf32>
    %c37 = arith.constant 37 : index
    %80 = memref.load %arg2[%c37] : memref<55xf32, #tpu.memory_space<smem>>
    %81 = vector.broadcast %80 : f32 to vector<8x256xf32>
    %82 = arith.mulf %3, %81 : vector<8x256xf32>
    %83 = arith.addf %79, %82 : vector<8x256xf32>
    %c46 = arith.constant 46 : index
    %84 = memref.load %arg2[%c46] : memref<55xf32, #tpu.memory_space<smem>>
    %85 = vector.broadcast %84 : f32 to vector<8x256xf32>
    %86 = arith.mulf %38, %85 : vector<8x256xf32>
    %87 = arith.addf %83, %86 : vector<8x256xf32>
    %88 = arith.addf %76, %87 : vector<8x256xf32>
    %c16_i32 = arith.constant 16 : i32
    %89 = tpu.dynamic_rotate %88 by %c16_i32 dim 1 : vector<8x256xf32>, i32 -> vector<8x256xf32>
    %c1_15 = arith.constant 1 : index
    %c0_16 = arith.constant 0 : index
    %90 = vector.load %arg3[%c1_15, %c0_16] : memref<9x256xf32, #tpu.memory_space<vmem>>, vector<1x256xf32>
    %91 = vector.broadcast %90 : vector<1x256xf32> to vector<8x256xf32>
    %92 = arith.mulf %89, %91 : vector<8x256xf32>
    %93 = arith.addf %65, %92 : vector<8x256xf32>
    %c2 = arith.constant 2 : index
    %94 = memref.load %arg2[%c2] : memref<55xf32, #tpu.memory_space<smem>>
    %95 = vector.broadcast %94 : f32 to vector<8x256xf32>
    %96 = arith.mulf %17, %95 : vector<8x256xf32>
    %c11 = arith.constant 11 : index
    %97 = memref.load %arg2[%c11] : memref<55xf32, #tpu.memory_space<smem>>
    %98 = vector.broadcast %97 : f32 to vector<8x256xf32>
    %99 = arith.mulf %1, %98 : vector<8x256xf32>
    %100 = arith.addf %96, %99 : vector<8x256xf32>
    %c20 = arith.constant 20 : index
    %101 = memref.load %arg2[%c20] : memref<55xf32, #tpu.memory_space<smem>>
    %102 = vector.broadcast %101 : f32 to vector<8x256xf32>
    %103 = arith.mulf %24, %102 : vector<8x256xf32>
    %104 = arith.addf %100, %103 : vector<8x256xf32>
    %c29 = arith.constant 29 : index
    %105 = memref.load %arg2[%c29] : memref<55xf32, #tpu.memory_space<smem>>
    %106 = vector.broadcast %105 : f32 to vector<8x256xf32>
    %107 = arith.mulf %31, %106 : vector<8x256xf32>
    %c38 = arith.constant 38 : index
    %108 = memref.load %arg2[%c38] : memref<55xf32, #tpu.memory_space<smem>>
    %109 = vector.broadcast %108 : f32 to vector<8x256xf32>
    %110 = arith.mulf %3, %109 : vector<8x256xf32>
    %111 = arith.addf %107, %110 : vector<8x256xf32>
    %c47 = arith.constant 47 : index
    %112 = memref.load %arg2[%c47] : memref<55xf32, #tpu.memory_space<smem>>
    %113 = vector.broadcast %112 : f32 to vector<8x256xf32>
    %114 = arith.mulf %38, %113 : vector<8x256xf32>
    %115 = arith.addf %111, %114 : vector<8x256xf32>
    %116 = arith.addf %104, %115 : vector<8x256xf32>
    %c15_i32 = arith.constant 15 : i32
    %117 = tpu.dynamic_rotate %116 by %c15_i32 dim 1 : vector<8x256xf32>, i32 -> vector<8x256xf32>
    %c2_17 = arith.constant 2 : index
    %c0_18 = arith.constant 0 : index
    %118 = vector.load %arg3[%c2_17, %c0_18] : memref<9x256xf32, #tpu.memory_space<vmem>>, vector<1x256xf32>
    %119 = vector.broadcast %118 : vector<1x256xf32> to vector<8x256xf32>
    %120 = arith.mulf %117, %119 : vector<8x256xf32>
    %121 = arith.addf %93, %120 : vector<8x256xf32>
    %c3 = arith.constant 3 : index
    %122 = memref.load %arg2[%c3] : memref<55xf32, #tpu.memory_space<smem>>
    %123 = vector.broadcast %122 : f32 to vector<8x256xf32>
    %124 = arith.mulf %17, %123 : vector<8x256xf32>
    %c12 = arith.constant 12 : index
    %125 = memref.load %arg2[%c12] : memref<55xf32, #tpu.memory_space<smem>>
    %126 = vector.broadcast %125 : f32 to vector<8x256xf32>
    %127 = arith.mulf %1, %126 : vector<8x256xf32>
    %128 = arith.addf %124, %127 : vector<8x256xf32>
    %c21 = arith.constant 21 : index
    %129 = memref.load %arg2[%c21] : memref<55xf32, #tpu.memory_space<smem>>
    %130 = vector.broadcast %129 : f32 to vector<8x256xf32>
    %131 = arith.mulf %24, %130 : vector<8x256xf32>
    %132 = arith.addf %128, %131 : vector<8x256xf32>
    %c30 = arith.constant 30 : index
    %133 = memref.load %arg2[%c30] : memref<55xf32, #tpu.memory_space<smem>>
    %134 = vector.broadcast %133 : f32 to vector<8x256xf32>
    %135 = arith.mulf %31, %134 : vector<8x256xf32>
    %c39 = arith.constant 39 : index
    %136 = memref.load %arg2[%c39] : memref<55xf32, #tpu.memory_space<smem>>
    %137 = vector.broadcast %136 : f32 to vector<8x256xf32>
    %138 = arith.mulf %3, %137 : vector<8x256xf32>
    %139 = arith.addf %135, %138 : vector<8x256xf32>
    %c48 = arith.constant 48 : index
    %140 = memref.load %arg2[%c48] : memref<55xf32, #tpu.memory_space<smem>>
    %141 = vector.broadcast %140 : f32 to vector<8x256xf32>
    %142 = arith.mulf %38, %141 : vector<8x256xf32>
    %143 = arith.addf %139, %142 : vector<8x256xf32>
    %144 = arith.addf %132, %143 : vector<8x256xf32>
    %c1_i32_19 = arith.constant 1 : i32
    %145 = tpu.dynamic_rotate %144 by %c1_i32_19 dim 1 : vector<8x256xf32>, i32 -> vector<8x256xf32>
    %c3_20 = arith.constant 3 : index
    %c0_21 = arith.constant 0 : index
    %146 = vector.load %arg3[%c3_20, %c0_21] : memref<9x256xf32, #tpu.memory_space<vmem>>, vector<1x256xf32>
    %147 = vector.broadcast %146 : vector<1x256xf32> to vector<8x256xf32>
    %148 = arith.mulf %145, %147 : vector<8x256xf32>
    %c4 = arith.constant 4 : index
    %149 = memref.load %arg2[%c4] : memref<55xf32, #tpu.memory_space<smem>>
    %150 = vector.broadcast %149 : f32 to vector<8x256xf32>
    %151 = arith.mulf %17, %150 : vector<8x256xf32>
    %c13 = arith.constant 13 : index
    %152 = memref.load %arg2[%c13] : memref<55xf32, #tpu.memory_space<smem>>
    %153 = vector.broadcast %152 : f32 to vector<8x256xf32>
    %154 = arith.mulf %1, %153 : vector<8x256xf32>
    %155 = arith.addf %151, %154 : vector<8x256xf32>
    %c22 = arith.constant 22 : index
    %156 = memref.load %arg2[%c22] : memref<55xf32, #tpu.memory_space<smem>>
    %157 = vector.broadcast %156 : f32 to vector<8x256xf32>
    %158 = arith.mulf %24, %157 : vector<8x256xf32>
    %159 = arith.addf %155, %158 : vector<8x256xf32>
    %c31 = arith.constant 31 : index
    %160 = memref.load %arg2[%c31] : memref<55xf32, #tpu.memory_space<smem>>
    %161 = vector.broadcast %160 : f32 to vector<8x256xf32>
    %162 = arith.mulf %31, %161 : vector<8x256xf32>
    %c40 = arith.constant 40 : index
    %163 = memref.load %arg2[%c40] : memref<55xf32, #tpu.memory_space<smem>>
    %164 = vector.broadcast %163 : f32 to vector<8x256xf32>
    %165 = arith.mulf %3, %164 : vector<8x256xf32>
    %166 = arith.addf %162, %165 : vector<8x256xf32>
    %c49 = arith.constant 49 : index
    %167 = memref.load %arg2[%c49] : memref<55xf32, #tpu.memory_space<smem>>
    %168 = vector.broadcast %167 : f32 to vector<8x256xf32>
    %169 = arith.mulf %38, %168 : vector<8x256xf32>
    %170 = arith.addf %166, %169 : vector<8x256xf32>
    %171 = arith.addf %159, %170 : vector<8x256xf32>
    %172 = arith.addf %148, %171 : vector<8x256xf32>
    %c5 = arith.constant 5 : index
    %173 = memref.load %arg2[%c5] : memref<55xf32, #tpu.memory_space<smem>>
    %174 = vector.broadcast %173 : f32 to vector<8x256xf32>
    %175 = arith.mulf %17, %174 : vector<8x256xf32>
    %c14 = arith.constant 14 : index
    %176 = memref.load %arg2[%c14] : memref<55xf32, #tpu.memory_space<smem>>
    %177 = vector.broadcast %176 : f32 to vector<8x256xf32>
    %178 = arith.mulf %1, %177 : vector<8x256xf32>
    %179 = arith.addf %175, %178 : vector<8x256xf32>
    %c23 = arith.constant 23 : index
    %180 = memref.load %arg2[%c23] : memref<55xf32, #tpu.memory_space<smem>>
    %181 = vector.broadcast %180 : f32 to vector<8x256xf32>
    %182 = arith.mulf %24, %181 : vector<8x256xf32>
    %183 = arith.addf %179, %182 : vector<8x256xf32>
    %c32 = arith.constant 32 : index
    %184 = memref.load %arg2[%c32] : memref<55xf32, #tpu.memory_space<smem>>
    %185 = vector.broadcast %184 : f32 to vector<8x256xf32>
    %186 = arith.mulf %31, %185 : vector<8x256xf32>
    %c41 = arith.constant 41 : index
    %187 = memref.load %arg2[%c41] : memref<55xf32, #tpu.memory_space<smem>>
    %188 = vector.broadcast %187 : f32 to vector<8x256xf32>
    %189 = arith.mulf %3, %188 : vector<8x256xf32>
    %190 = arith.addf %186, %189 : vector<8x256xf32>
    %c50 = arith.constant 50 : index
    %191 = memref.load %arg2[%c50] : memref<55xf32, #tpu.memory_space<smem>>
    %192 = vector.broadcast %191 : f32 to vector<8x256xf32>
    %193 = arith.mulf %38, %192 : vector<8x256xf32>
    %194 = arith.addf %190, %193 : vector<8x256xf32>
    %195 = arith.addf %183, %194 : vector<8x256xf32>
    %c255_i32 = arith.constant 255 : i32
    %196 = tpu.dynamic_rotate %195 by %c255_i32 dim 1 : vector<8x256xf32>, i32 -> vector<8x256xf32>
    %c5_22 = arith.constant 5 : index
    %c0_23 = arith.constant 0 : index
    %197 = vector.load %arg3[%c5_22, %c0_23] : memref<9x256xf32, #tpu.memory_space<vmem>>, vector<1x256xf32>
    %198 = vector.broadcast %197 : vector<1x256xf32> to vector<8x256xf32>
    %199 = arith.mulf %196, %198 : vector<8x256xf32>
    %200 = arith.addf %172, %199 : vector<8x256xf32>
    %c6 = arith.constant 6 : index
    %201 = memref.load %arg2[%c6] : memref<55xf32, #tpu.memory_space<smem>>
    %202 = vector.broadcast %201 : f32 to vector<8x256xf32>
    %203 = arith.mulf %17, %202 : vector<8x256xf32>
    %c15 = arith.constant 15 : index
    %204 = memref.load %arg2[%c15] : memref<55xf32, #tpu.memory_space<smem>>
    %205 = vector.broadcast %204 : f32 to vector<8x256xf32>
    %206 = arith.mulf %1, %205 : vector<8x256xf32>
    %207 = arith.addf %203, %206 : vector<8x256xf32>
    %c24 = arith.constant 24 : index
    %208 = memref.load %arg2[%c24] : memref<55xf32, #tpu.memory_space<smem>>
    %209 = vector.broadcast %208 : f32 to vector<8x256xf32>
    %210 = arith.mulf %24, %209 : vector<8x256xf32>
    %211 = arith.addf %207, %210 : vector<8x256xf32>
    %c33 = arith.constant 33 : index
    %212 = memref.load %arg2[%c33] : memref<55xf32, #tpu.memory_space<smem>>
    %213 = vector.broadcast %212 : f32 to vector<8x256xf32>
    %214 = arith.mulf %31, %213 : vector<8x256xf32>
    %c42 = arith.constant 42 : index
    %215 = memref.load %arg2[%c42] : memref<55xf32, #tpu.memory_space<smem>>
    %216 = vector.broadcast %215 : f32 to vector<8x256xf32>
    %217 = arith.mulf %3, %216 : vector<8x256xf32>
    %218 = arith.addf %214, %217 : vector<8x256xf32>
    %c51 = arith.constant 51 : index
    %219 = memref.load %arg2[%c51] : memref<55xf32, #tpu.memory_space<smem>>
    %220 = vector.broadcast %219 : f32 to vector<8x256xf32>
    %221 = arith.mulf %38, %220 : vector<8x256xf32>
    %222 = arith.addf %218, %221 : vector<8x256xf32>
    %223 = arith.addf %211, %222 : vector<8x256xf32>
    %c241_i32 = arith.constant 241 : i32
    %224 = tpu.dynamic_rotate %223 by %c241_i32 dim 1 : vector<8x256xf32>, i32 -> vector<8x256xf32>
    %c6_24 = arith.constant 6 : index
    %c0_25 = arith.constant 0 : index
    %225 = vector.load %arg3[%c6_24, %c0_25] : memref<9x256xf32, #tpu.memory_space<vmem>>, vector<1x256xf32>
    %226 = vector.broadcast %225 : vector<1x256xf32> to vector<8x256xf32>
    %227 = arith.mulf %224, %226 : vector<8x256xf32>
    %c7 = arith.constant 7 : index
    %228 = memref.load %arg2[%c7] : memref<55xf32, #tpu.memory_space<smem>>
    %229 = vector.broadcast %228 : f32 to vector<8x256xf32>
    %230 = arith.mulf %17, %229 : vector<8x256xf32>
    %c16 = arith.constant 16 : index
    %231 = memref.load %arg2[%c16] : memref<55xf32, #tpu.memory_space<smem>>
    %232 = vector.broadcast %231 : f32 to vector<8x256xf32>
    %233 = arith.mulf %1, %232 : vector<8x256xf32>
    %234 = arith.addf %230, %233 : vector<8x256xf32>
    %c25 = arith.constant 25 : index
    %235 = memref.load %arg2[%c25] : memref<55xf32, #tpu.memory_space<smem>>
    %236 = vector.broadcast %235 : f32 to vector<8x256xf32>
    %237 = arith.mulf %24, %236 : vector<8x256xf32>
    %238 = arith.addf %234, %237 : vector<8x256xf32>
    %c34 = arith.constant 34 : index
    %239 = memref.load %arg2[%c34] : memref<55xf32, #tpu.memory_space<smem>>
    %240 = vector.broadcast %239 : f32 to vector<8x256xf32>
    %241 = arith.mulf %31, %240 : vector<8x256xf32>
    %c43 = arith.constant 43 : index
    %242 = memref.load %arg2[%c43] : memref<55xf32, #tpu.memory_space<smem>>
    %243 = vector.broadcast %242 : f32 to vector<8x256xf32>
    %244 = arith.mulf %3, %243 : vector<8x256xf32>
    %245 = arith.addf %241, %244 : vector<8x256xf32>
    %c52 = arith.constant 52 : index
    %246 = memref.load %arg2[%c52] : memref<55xf32, #tpu.memory_space<smem>>
    %247 = vector.broadcast %246 : f32 to vector<8x256xf32>
    %248 = arith.mulf %38, %247 : vector<8x256xf32>
    %249 = arith.addf %245, %248 : vector<8x256xf32>
    %250 = arith.addf %238, %249 : vector<8x256xf32>
    %c240_i32 = arith.constant 240 : i32
    %251 = tpu.dynamic_rotate %250 by %c240_i32 dim 1 : vector<8x256xf32>, i32 -> vector<8x256xf32>
    %c7_26 = arith.constant 7 : index
    %c0_27 = arith.constant 0 : index
    %252 = vector.load %arg3[%c7_26, %c0_27] : memref<9x256xf32, #tpu.memory_space<vmem>>, vector<1x256xf32>
    %253 = vector.broadcast %252 : vector<1x256xf32> to vector<8x256xf32>
    %254 = arith.mulf %251, %253 : vector<8x256xf32>
    %255 = arith.addf %227, %254 : vector<8x256xf32>
    %c8 = arith.constant 8 : index
    %256 = memref.load %arg2[%c8] : memref<55xf32, #tpu.memory_space<smem>>
    %257 = vector.broadcast %256 : f32 to vector<8x256xf32>
    %258 = arith.mulf %17, %257 : vector<8x256xf32>
    %c17 = arith.constant 17 : index
    %259 = memref.load %arg2[%c17] : memref<55xf32, #tpu.memory_space<smem>>
    %260 = vector.broadcast %259 : f32 to vector<8x256xf32>
    %261 = arith.mulf %1, %260 : vector<8x256xf32>
    %262 = arith.addf %258, %261 : vector<8x256xf32>
    %c26 = arith.constant 26 : index
    %263 = memref.load %arg2[%c26] : memref<55xf32, #tpu.memory_space<smem>>
    %264 = vector.broadcast %263 : f32 to vector<8x256xf32>
    %265 = arith.mulf %24, %264 : vector<8x256xf32>
    %266 = arith.addf %262, %265 : vector<8x256xf32>
    %c35 = arith.constant 35 : index
    %267 = memref.load %arg2[%c35] : memref<55xf32, #tpu.memory_space<smem>>
    %268 = vector.broadcast %267 : f32 to vector<8x256xf32>
    %269 = arith.mulf %31, %268 : vector<8x256xf32>
    %c44 = arith.constant 44 : index
    %270 = memref.load %arg2[%c44] : memref<55xf32, #tpu.memory_space<smem>>
    %271 = vector.broadcast %270 : f32 to vector<8x256xf32>
    %272 = arith.mulf %3, %271 : vector<8x256xf32>
    %273 = arith.addf %269, %272 : vector<8x256xf32>
    %c53 = arith.constant 53 : index
    %274 = memref.load %arg2[%c53] : memref<55xf32, #tpu.memory_space<smem>>
    %275 = vector.broadcast %274 : f32 to vector<8x256xf32>
    %276 = arith.mulf %38, %275 : vector<8x256xf32>
    %277 = arith.addf %273, %276 : vector<8x256xf32>
    %278 = arith.addf %266, %277 : vector<8x256xf32>
    %c239_i32 = arith.constant 239 : i32
    %279 = tpu.dynamic_rotate %278 by %c239_i32 dim 1 : vector<8x256xf32>, i32 -> vector<8x256xf32>
    %c8_28 = arith.constant 8 : index
    %c0_29 = arith.constant 0 : index
    %280 = vector.load %arg3[%c8_28, %c0_29] : memref<9x256xf32, #tpu.memory_space<vmem>>, vector<1x256xf32>
    %281 = vector.broadcast %280 : vector<1x256xf32> to vector<8x256xf32>
    %282 = arith.mulf %279, %281 : vector<8x256xf32>
    %283 = arith.addf %255, %282 : vector<8x256xf32>
    %c54 = arith.constant 54 : index
    %284 = memref.load %arg2[%c54] : memref<55xf32, #tpu.memory_space<smem>>
    %285 = arith.addf %121, %200 : vector<8x256xf32>
    %286 = vector.broadcast %284 : f32 to vector<8x256xf32>
    %287 = arith.addf %283, %286 : vector<8x256xf32>
    %288 = arith.addf %285, %287 : vector<8x256xf32>
    %cst = arith.constant 0.000000e+00 : f32
    %289 = vector.broadcast %cst : f32 to vector<8x256xf32>
    %290 = arith.maximumf %288, %289 : vector<8x256xf32>
    %291 = arith.negf %290 : vector<8x256xf32>
    %292 = math.exp %291 : vector<8x256xf32>
    %cst_30 = arith.constant 1.000000e+00 : f32
    %293 = vector.broadcast %cst_30 : f32 to vector<8x256xf32>
    %294 = arith.addf %293, %292 : vector<8x256xf32>
    %295 = arith.divf %293, %294 : vector<8x256xf32>
    %c0_31 = arith.constant 0 : index
    %c0_32 = arith.constant 0 : index
    %c0_33 = arith.constant 0 : index
    %296 = vector.load %arg7[%c0_31, %c0_32, %c0_33] : memref<1x8x256xf32, #tpu.memory_space<vmem>>, vector<1x8x256xf32>
    %297 = vector.shape_cast %296 : vector<1x8x256xf32> to vector<8x256xf32>
    %298 = vector.shape_cast %295 : vector<8x256xf32> to vector<1x8x256xf32>
    tpu.vector_store %arg7[%c0_31, %c0_32, %c0_33], %298 {strides = array<i32>} : memref<1x8x256xf32, #tpu.memory_space<vmem>>, vector<1x8x256xf32>,
    return
  }
  func.func @transform_0(%arg0: i32, %arg1: i32) -> i32 {
    %c0_i32 = arith.constant 0 : i32
    %c0_i32_0 = arith.constant 0 : i32
    return %c0_i32 : i32
  }
  func.func @transform_1(%arg0: i32, %arg1: i32) -> (i32, i32) {
    %c0_i32 = arith.constant 0 : i32
    %c0_i32_0 = arith.constant 0 : i32
    %c0_i32_1 = arith.constant 0 : i32
    return %c0_i32, %c0_i32_0 : i32, i32
  }
  func.func @transform_2(%arg0: i32, %arg1: i32) -> (i32, i32, i32) {
    %c0_i32 = arith.constant 0 : i32
    %c0_i32_0 = arith.constant 0 : i32
    return %arg0, %arg1, %c0_i32 : i32, i32, i32
  }
  func.func @transform_3(%arg0: i32, %arg1: i32) -> (i32, i32, i32) {
    %c0_i32 = arith.constant 0 : i32
    %c0_i32_0 = arith.constant 0 : i32
    return %arg0, %arg1, %c0_i32 : i32, i32, i32
  }
  func.func @transform_4(%arg0: i32, %arg1: i32) -> (i32, i32, i32, i32) {
    %c0_i32 = arith.constant 0 : i32
    %c0_i32_0 = arith.constant 0 : i32
    %c0_i32_1 = arith.constant 0 : i32
    return %arg0, %arg1, %c0_i32, %c0_i32_0 : i32, i32, i32, i32
  }
  func.func @transform_5(%arg0: i32, %arg1: i32) -> (i32, i32, i32) {
    %c0_i32 = arith.constant 0 : i32
    %c0_i32_0 = arith.constant 0 : i32
    return %arg0, %arg1, %c0_i32 : i32, i32, i32
  }
}

</mosaic_0001>

<llo_original>
// kernel: exnet_forward.1
$region0: #{exnet_forward.1}
  #allocation0 [shape = 'u32[]', space=smem, size = 0x4, offset = 0x4, fixed_abs, tag = 'smem constant byte address 0x4 - core index']
  #allocation1 [shape = 'u32[72,128]{1,0:T(1,128)}', space=vmem, size = 0x9000, scoped, tag = 'internal scratch']
  %s0 = inlined_call_operand.vmem [shape: f32[55], index: 0, kind: input, shape index: {}]
  %s1 = inlined_call_operand.vmem [shape: f32[9,256], index: 1, kind: input, shape index: {}]
  %s2 = inlined_call_operand.vmem [shape: f32[2,16,256], index: 2, kind: input, shape index: {}]
  %s3 = inlined_call_operand.vmem [shape: f32[2,16,256], index: 3, kind: input, shape index: {}]
  %s4 = inlined_call_operand.vmem [shape: f32[2,2,4,256], index: 4, kind: input, shape index: {}]
  %s5 = inlined_call_operand.vmem [shape: f32[2,16,256], index: 5, kind: output, shape index: {}]
  %s6 = sld [smem:[#allocation0]]
  $region57: #{exnet_forward.1} parent=0
    _
  %s8 = ssub.s32 1, %s6
  %s9 = scalar_select 0, %s8, %s6
  $region1: #{exnet_forward.1} parent=0
    #allocation2 [shape = 'u8[512]{0}', space=smem, size = 0x200, scoped, tag = 'input window, operand 0, single buffered']
    #allocation3 [shape = 's32[2]{0}', space=sflag, size = 0x8, scoped, tag = 'scoped memory for exnet_forward.1']
    %10 = vsyncpa [#allocation3], 0
    loop: start=0, step=1, limit=6
    $region2: #{exnet_forward.1} parent=1 // loop_pre_header
      _
    $region3: #{exnet_forward.1} parent=1 // loop_header
      %s12 = sphi 0, %s16
      %p13 = scmp.ge.s32.totalorder %s12, 6
      %s19 = sphi 0, %s31
      %s20 = sphi 0, %s27
      %s21 = sphi 0, %s19
      %s22 = sphi 0, %s20
      %s23 = sphi 0, %s21
      %s24 = sphi 0, %s22
      %s32 = sphi 0, %s32
      %s34 = sphi 0, %s32
      %s35 = sphi 0, %s34
      %s49 = sphi 0, %s35
      %s53 = sphi 0, %s53
      %s55 = sphi 0, %s53
      %s56 = sphi 0, %s55
      %s70 = sphi 0, %s56
      %s78 = sphi 0, %s80
      %s81 = sphi 0, %s78
      %s82 = sphi 0, %s81
      %s98 = sphi 0, %s82
      %s106 = sphi 0, %s108
      %s109 = sphi 0, %s106
      %s110 = sphi 0, %s109
      %s126 = sphi 0, %s110
      %s134 = sphi 0, %s136
      %s137 = sphi 0, %s134
      %s138 = sphi 0, %s137
      %s154 = sphi 0, %s138
      %s162 = sphi 0, %s164
      %s165 = sphi 0, %s162
      %s166 = sphi 0, %s165
      %s182 = sphi 0, %s166
    $region4: #{exnet_forward.1} parent=1 // loop_header_branch
      %15 = sbr.rel (%p13) target = $region8
    $region5: #{exnet_forward.1} parent=1 // loop_body
      %s17 = ssub.s32 %s12, 1
      %s18 = ssub.s32 %s12, 2
      %s25 = sadd.s32 1, %s20
      %p26 = scmp.ge.s32.totalorder %s25, 2
      %s27 = scalar_select %p26, 0, %s25
      %s28 = sadd.s32 1, %s19
      %s29 = scalar_select %p26, %s28, %s19
      %p30 = scmp.ge.s32.totalorder %s29, 2
      %s31 = scalar_select %p30, 0, %s29
      %s33 = sadd.s32 %s32, 1
      %p36 = scmp.eq.s32.totalorder %s12, 3
      %p37 = scmp.ne.s32.totalorder %s32, %s34
      %p38 = scmp.eq.s32.totalorder %s12, 0
      %p39 = por %p37, %p38
      %p40 = scmp.ne.s32.totalorder %s32, %s34
      %p41 = scmp.eq.s32.totalorder %s17, 3
      %p42 = por %p40, %p41
      %p43 = scmp.ne.s32.totalorder %s34, %s35
      %p44 = scmp.eq.s32.totalorder %s17, 0
      %p45 = por %p43, %p44
      %p46 = scmp.ne.s32.totalorder %s34, %s35
      %p47 = scmp.eq.s32.totalorder %s18, 3
      %p48 = por %p46, %p47
      %p50 = scmp.ne.s32.totalorder %s35, %s49
      %p51 = scmp.eq.s32.totalorder %s18, 0
      %p52 = por %p50, %p51
      %s54 = sadd.s32 %s53, 1
      %p57 = scmp.eq.s32.totalorder %s12, 3
      %p58 = scmp.ne.s32.totalorder %s53, %s55
      %p59 = scmp.eq.s32.totalorder %s12, 0
      %p60 = por %p58, %p59
      %p61 = scmp.ne.s32.totalorder %s53, %s55
      %p62 = scmp.eq.s32.totalorder %s17, 3
      %p63 = por %p61, %p62
      %p64 = scmp.ne.s32.totalorder %s55, %s56
      %p65 = scmp.eq.s32.totalorder %s17, 0
      %p66 = por %p64, %p65
      %p67 = scmp.ne.s32.totalorder %s55, %s56
      %p68 = scmp.eq.s32.totalorder %s18, 3
      %p69 = por %p67, %p68
      %p71 = scmp.ne.s32.totalorder %s56, %s70
      %p72 = scmp.eq.s32.totalorder %s18, 0
      %p73 = por %p71, %p72
      %s74 = ssub.s32 %s19, %s31
      %s75 = ssub.s32 %s20, %s27
      %s76 = sor.u32 %s74, %s75
      %p77 = scmp.eq.s32.totalorder %s76, 0
      %s79 = sadd.s32 %s78, 1
      %s80 = scalar_select %p77, %s78, %s79
      %p83 = pneg %p77
      %p84 = scmp.eq.s32.totalorder %s12, 3
      %p85 = por %p83, %p84
      %p86 = scmp.ne.s32.totalorder %s78, %s81
      %p87 = scmp.eq.s32.totalorder %s12, 0
      %p88 = por %p86, %p87
      %p89 = scmp.ne.s32.totalorder %s78, %s81
      %p90 = scmp.eq.s32.totalorder %s17, 3
      %p91 = por %p89, %p90
      %p92 = scmp.ne.s32.totalorder %s81, %s82
      %p93 = scmp.eq.s32.totalorder %s17, 0
      %p94 = por %p92, %p93
      %p95 = scmp.ne.s32.totalorder %s81, %s82
      %p96 = scmp.eq.s32.totalorder %s18, 3
      %p97 = por %p95, %p96
      %p99 = scmp.ne.s32.totalorder %s82, %s98
      %p100 = scmp.eq.s32.totalorder %s18, 0
      %p101 = por %p99, %p100
      %s102 = ssub.s32 %s19, %s31
      %s103 = ssub.s32 %s20, %s27
      %s104 = sor.u32 %s102, %s103
      %p105 = scmp.eq.s32.totalorder %s104, 0
      %s107 = sadd.s32 %s106, 1
      %s108 = scalar_select %p105, %s106, %s107
      %p111 = pneg %p105
      %p112 = scmp.eq.s32.totalorder %s12, 3
      %p113 = por %p111, %p112
      %p114 = scmp.ne.s32.totalorder %s106, %s109
      %p115 = scmp.eq.s32.totalorder %s12, 0
      %p116 = por %p114, %p115
      %p117 = scmp.ne.s32.totalorder %s106, %s109
      %p118 = scmp.eq.s32.totalorder %s17, 3
      %p119 = por %p117, %p118
      %p120 = scmp.ne.s32.totalorder %s109, %s110
      %p121 = scmp.eq.s32.totalorder %s17, 0
      %p122 = por %p120, %p121
      %p123 = scmp.ne.s32.totalorder %s109, %s110
      %p124 = scmp.eq.s32.totalorder %s18, 3
      %p125 = por %p123, %p124
      %p127 = scmp.ne.s32.totalorder %s110, %s126
      %p128 = scmp.eq.s32.totalorder %s18, 0
      %p129 = por %p127, %p128
      %s130 = ssub.s32 %s19, %s31
      %s131 = ssub.s32 %s20, %s27
      %s132 = sor.u32 %s130, %s131
      %p133 = scmp.eq.s32.totalorder %s132, 0
      %s135 = sadd.s32 %s134, 1
      %s136 = scalar_select %p133, %s134, %s135
      %p139 = pneg %p133
      %p140 = scmp.eq.s32.totalorder %s12, 3
      %p141 = por %p139, %p140
      %p142 = scmp.ne.s32.totalorder %s134, %s137
      %p143 = scmp.eq.s32.totalorder %s12, 0
      %p144 = por %p142, %p143
      %p145 = scmp.ne.s32.totalorder %s134, %s137
      %p146 = scmp.eq.s32.totalorder %s17, 3
      %p147 = por %p145, %p146
      %p148 = scmp.ne.s32.totalorder %s137, %s138
      %p149 = scmp.eq.s32.totalorder %s17, 0
      %p150 = por %p148, %p149
      %p151 = scmp.ne.s32.totalorder %s137, %s138
      %p152 = scmp.eq.s32.totalorder %s18, 3
      %p153 = por %p151, %p152
      %p155 = scmp.ne.s32.totalorder %s138, %s154
      %p156 = scmp.eq.s32.totalorder %s18, 0
      %p157 = por %p155, %p156
      %s158 = ssub.s32 %s19, %s31
      %s159 = ssub.s32 %s20, %s27
      %s160 = sor.u32 %s158, %s159
      %p161 = scmp.eq.s32.totalorder %s160, 0
      %s163 = sadd.s32 %s162, 1
      %s164 = scalar_select %p161, %s162, %s163
      %p167 = pneg %p161
      %p168 = scmp.eq.s32.totalorder %s12, 3
      %p169 = por %p167, %p168
      %p170 = scmp.ne.s32.totalorder %s162, %s165
      %p171 = scmp.eq.s32.totalorder %s12, 0
      %p172 = por %p170, %p171
      %p173 = scmp.ne.s32.totalorder %s162, %s165
      %p174 = scmp.eq.s32.totalorder %s17, 3
      %p175 = por %p173, %p174
      %p176 = scmp.ne.s32.totalorder %s165, %s166
      %p177 = scmp.eq.s32.totalorder %s17, 0
      %p178 = por %p176, %p177
      %p179 = scmp.ne.s32.totalorder %s165, %s166
      %p180 = scmp.eq.s32.totalorder %s18, 3
      %p181 = por %p179, %p180
      %p183 = scmp.ne.s32.totalorder %s166, %s182
      %p184 = scmp.eq.s32.totalorder %s18, 0
      %p185 = por %p183, %p184
      %p186 = scmp.le.s32.totalorder 1, %s12
      %p187 = scmp.lt.s32.totalorder %s12, 5
      %p188 = pnand %p186, %p187
      %p189 = pneg %p188
      // Predicated region
      $region9: #{exnet_forward.1} parent=5 // pred_check
        _
      $region10: #{exnet_forward.1} parent=5 // pred_check_branch
        %191 = sbr.rel (%p188) target = $region12
      $region11: #{exnet_forward.1} parent=5 // pred_region
        %s192 = ssub.s32 %s12, 1
        // Predicated region
        $region13: #{exnet_forward.1} parent=11 // pred_check
          %p193 = pneg %p45
        $region14: #{exnet_forward.1} parent=11 // pred_check_branch
          %195 = sbr.rel (%p193) target = $region16
        $region15: #{exnet_forward.1} parent=11 // pred_region
          %197 = vsyncadd [#allocation3], 0
          %s199 = sshll.u32 %s0, 4
          %s200 = int_to_ptr.vmem [resolvable:$true] %s199
          %202 = dma.vmem_to_smem %s200, 16, [#allocation2], [#allocation3]
        $region16: #{exnet_forward.1} parent=11 // pred_fallthru
          _
        // Predicated region
        $region17: #{exnet_forward.1} parent=11 // pred_check
          %p203 = pneg %p66
        $region18: #{exnet_forward.1} parent=11 // pred_check_branch
          %205 = sbr.rel (%p203) target = $region20
        $region19: #{exnet_forward.1} parent=11 // pred_region
          _
        $region20: #{exnet_forward.1} parent=11 // pred_fallthru
          _
      $region12: #{exnet_forward.1} parent=5 // pred_fallthru
        _
      %p206 = scmp.lt.s32.totalorder %s12, 4
      // Predicated region
      $region21: #{exnet_forward.1} parent=5 // pred_check
        %p207 = pneg %p206
      $region22: #{exnet_forward.1} parent=5 // pred_check_branch
        %209 = sbr.rel (%p207) target = $region24
      $region23: #{exnet_forward.1} parent=5 // pred_region
        // Predicated region
        $region25: #{exnet_forward.1} parent=23 // pred_check
          %p210 = pneg %p88
        $region26: #{exnet_forward.1} parent=23 // pred_check_branch
          %212 = sbr.rel (%p210) target = $region28
        $region27: #{exnet_forward.1} parent=23 // pred_region
          %p213 = scmp.lt.s32.totalorder %s19, 1
          %s214 = scalar_select %p213, %s19, 1
          %p215 = scmp.lt.s32.totalorder %s20, 1
          %s216 = scalar_select %p215, %s20, 1
          %s217 = smul.addr %s216, 2
          %s218 = smul.addr %s214, 4
          %s219 = sadd.s32 %s217, %s218
          %s220 = smul.addr %s219, 8
          %s221 = scalar_lea.vmem %s2, %s220
        $region28: #{exnet_forward.1} parent=23 // pred_fallthru
          _
        // Predicated region
        $region29: #{exnet_forward.1} parent=23 // pred_check
          %p222 = pneg %p116
        $region30: #{exnet_forward.1} parent=23 // pred_check_branch
          %224 = sbr.rel (%p222) target = $region32
        $region31: #{exnet_forward.1} parent=23 // pred_region
          %p225 = scmp.lt.s32.totalorder %s19, 1
          %s226 = scalar_select %p225, %s19, 1
          %p227 = scmp.lt.s32.totalorder %s20, 1
          %s228 = scalar_select %p227, %s20, 1
          %s229 = smul.addr %s228, 2
          %s230 = smul.addr %s226, 4
          %s231 = sadd.s32 %s229, %s230
          %s232 = smul.addr %s231, 8
          %s233 = scalar_lea.vmem %s3, %s232
        $region32: #{exnet_forward.1} parent=23 // pred_fallthru
          _
        // Predicated region
        $region33: #{exnet_forward.1} parent=23 // pred_check
          %p234 = pneg %p144
        $region34: #{exnet_forward.1} parent=23 // pred_check_branch
          %236 = sbr.rel (%p234) target = $region36
        $region35: #{exnet_forward.1} parent=23 // pred_region
          %p237 = scmp.lt.s32.totalorder %s19, 1
          %s238 = scalar_select %p237, %s19, 1
          %p239 = scmp.lt.s32.totalorder %s20, 1
          %s240 = scalar_select %p239, %s20, 1
          %s241 = smul.addr %s240, 2
          %s242 = smul.addr %s238, 4
          %s243 = sadd.s32 %s241, %s242
          %s244 = smul.addr %s243, 4
          %s245 = scalar_lea.vmem %s4, %s244
        $region36: #{exnet_forward.1} parent=23 // pred_fallthru
          _
      $region24: #{exnet_forward.1} parent=5 // pred_fallthru
        _
      %p246 = scmp.le.s32.totalorder 1, %s12
      %p247 = scmp.lt.s32.totalorder %s12, 5
      %p248 = pnand %p246, %p247
      %p249 = pneg %p248
      // Predicated region
      $region37: #{exnet_forward.1} parent=5 // pred_check
        _
      $region38: #{exnet_forward.1} parent=5 // pred_check_branch
        %251 = sbr.rel (%p248) target = $region40
      $region39: #{exnet_forward.1} parent=5 // pred_region
        %s252 = ssub.s32 %s12, 1
        // Predicated region
        $region41: #{exnet_forward.1} parent=39 // pred_check
          %p253 = pneg %p45
        $region42: #{exnet_forward.1} parent=39 // pred_check_branch
          %255 = sbr.rel (%p253) target = $region44
        $region43: #{exnet_forward.1} parent=39 // pred_region
          %257 = dma.done [#allocation3], 16
        $region44: #{exnet_forward.1} parent=39 // pred_fallthru
          _
        %258 = sfence
        %p259 = pneg %p45
        %p260 = pneg %p42
        %p261 = pneg %p66
        %p262 = pneg %p63
        %p263 = scmp.lt.s32.totalorder %s21, 1
        %s264 = scalar_select %p263, %s21, 1
        %p265 = scmp.lt.s32.totalorder %s22, 1
        %s266 = scalar_select %p265, %s22, 1
        %s267 = smul.addr %s266, 2
        %s268 = smul.addr %s264, 4
        %s269 = sadd.s32 %s267, %s268
        %s270 = smul.addr %s269, 8
        %s271 = scalar_lea.vmem %s2, %s270
        %p272 = pneg %p94
        %p273 = pneg %p91
        %p274 = scmp.lt.s32.totalorder %s21, 1
        %s275 = scalar_select %p274, %s21, 1
        %p276 = scmp.lt.s32.totalorder %s22, 1
        %s277 = scalar_select %p276, %s22, 1
        %s278 = smul.addr %s277, 2
        %s279 = smul.addr %s275, 4
        %s280 = sadd.s32 %s278, %s279
        %s281 = smul.addr %s280, 8
        %s282 = scalar_lea.vmem %s3, %s281
        %p283 = pneg %p122
        %p284 = pneg %p119
        %p285 = scmp.lt.s32.totalorder %s21, 1
        %s286 = scalar_select %p285, %s21, 1
        %p287 = scmp.lt.s32.totalorder %s22, 1
        %s288 = scalar_select %p287, %s22, 1
        %s289 = smul.addr %s288, 2
        %s290 = smul.addr %s286, 4
        %s291 = sadd.s32 %s289, %s290
        %s292 = smul.addr %s291, 4
        %s293 = scalar_lea.vmem %s4, %s292
        %p294 = pneg %p150
        %p295 = pneg %p147
        %p296 = pneg %p178
        %p297 = pneg %p175
        %p298 = scmp.lt.s32.totalorder %s21, 1
        %s299 = scalar_select %p298, %s21, 1
        %p300 = scmp.lt.s32.totalorder %s22, 1
        %s301 = scalar_select %p300, %s22, 1
        %s302 = smul.addr %s301, 2
        %s303 = smul.addr %s299, 4
        %s304 = sadd.s32 %s302, %s303
        %s305 = smul.addr %s304, 8
        %s306 = scalar_lea.vmem %s5, %s305
        %p307 = scmp.lt.s32.totalorder %s21, 1
        %s308 = scalar_select %p307, %s21, 1
        %p309 = scmp.lt.s32.totalorder %s22, 1
        %s310 = scalar_select %p309, %s22, 1
        %s311 = smul.addr %s310, 2
        %s312 = smul.addr %s308, 4
        %s313 = sadd.s32 %s311, %s312
        %s314 = smul.addr %s313, 8
        %s315 = scalar_lea.vmem %s2, %s314
        %p316 = scmp.lt.s32.totalorder %s21, 1
        %s317 = scalar_select %p316, %s21, 1
        %p318 = scmp.lt.s32.totalorder %s22, 1
        %s319 = scalar_select %p318, %s22, 1
        %s320 = smul.addr %s319, 2
        %s321 = smul.addr %s317, 4
        %s322 = sadd.s32 %s320, %s321
        %s323 = smul.addr %s322, 8
        %s324 = scalar_lea.vmem %s3, %s323
        %p325 = scmp.lt.s32.totalorder %s21, 1
        %s326 = scalar_select %p325, %s21, 1
        %p327 = scmp.lt.s32.totalorder %s22, 1
        %s328 = scalar_select %p327, %s22, 1
        %s329 = smul.addr %s328, 2
        %s330 = smul.addr %s326, 4
        %s331 = sadd.s32 %s329, %s330
        %s332 = smul.addr %s331, 4
        %s333 = scalar_lea.vmem %s4, %s332
        %p334 = scmp.lt.s32.totalorder %s21, 1
        %s335 = scalar_select %p334, %s21, 1
        %p336 = scmp.lt.s32.totalorder %s22, 1
        %s337 = scalar_select %p336, %s22, 1
        %s338 = smul.addr %s337, 2
        %s339 = smul.addr %s335, 4
        %s340 = sadd.s32 %s338, %s339
        %s341 = smul.addr %s340, 8
        %s342 = scalar_lea.vmem %s5, %s341
        %v343 = vld [vmem:[%s315] sm:$0xff]
        %v344 = vld [vmem:[%s315 + $0x8] sm:$0xff]
        %v345 = vld [vmem:[%s324] sm:$0xff]
        %v346 = vld [vmem:[%s324 + $0x8] sm:$0xff]
        %v347 = vld [vmem:[%s333] sm:$0xff]
        %v348 = vlaneseq
        %v349 = vshrl.u32 %v348, 7
        %vm350 = vcmp.eq.s32.totalorder %v349, 0
        %vm351 = vcmp.eq.s32.totalorder %v349, 7
        %v352 = vrot.slane %v343, 7
        %v353 = vrot.slane %v344, 7
        %v354 = vsel %vm350, 1, 0
        %vm355 = vcmp.eq.s32.totalorder %v354, 1
        %v357 = vperm.slane %v347, 0
        %v358 = vperm.slane %v347, 4
        %v361 = vperm.slane %v357, 0
        %v362 = vperm.slane %v358, 0
        %v363 = vsel %vm355, %v361, %v352
        %v364 = vsel %vm355, %v362, %v353
        %v365 = vrot.slane %v343, 1
        %v366 = vrot.slane %v344, 1
        %v367 = vsel %vm351, 1, 0
        %vm368 = vcmp.eq.s32.totalorder %v367, 1
        %v369 = vperm.slane %v347, 1
        %v370 = vperm.slane %v347, 5
        %v373 = vperm.slane %v369, 1
        %v374 = vperm.slane %v370, 1
        %v375 = vsel %vm368, %v373, %v365
        %v376 = vsel %vm368, %v374, %v366
        %v377 = vrot.slane %v345, 7
        %v378 = vrot.slane %v346, 7
        %v379 = vperm.slane %v347, 2
        %v380 = vperm.slane %v347, 6
        %v383 = vperm.slane %v379, 2
        %v384 = vperm.slane %v380, 2
        %v385 = vsel %vm355, %v383, %v377
        %v386 = vsel %vm355, %v384, %v378
        %v387 = vrot.slane %v345, 1
        %v388 = vrot.slane %v346, 1
        %v389 = vperm.slane %v347, 3
        %v390 = vperm.slane %v347, 7
        %v393 = vperm.slane %v389, 3
        %v394 = vperm.slane %v390, 3
        %v395 = vsel %vm368, %v393, %v387
        %v396 = vsel %vm368, %v394, %v388
        %s397 = sld [smem:[#allocation2]]
        %v398 = vstv %s397
        %v399 = vmul.f32 %v363, %v398
        %v400 = vmul.f32 %v364, %v398
        %s401 = sld [smem:[#allocation2 + $0x9]]
        %v402 = vstv %s401
        %v403 = vmul.f32 %v343, %v402
        %v404 = vmul.f32 %v344, %v402
        %v405 = vadd.f32 %v399, %v403
        %v406 = vadd.f32 %v400, %v404
        %s407 = sld [smem:[#allocation2 + $0x12]]
        %v408 = vstv %s407
        %v409 = vmul.f32 %v375, %v408
        %v410 = vmul.f32 %v376, %v408
        %v411 = vadd.f32 %v405, %v409
        %v412 = vadd.f32 %v406, %v410
        %s413 = sld [smem:[#allocation2 + $0x1b]]
        %v414 = vstv %s413
        %v415 = vmul.f32 %v385, %v414
        %v416 = vmul.f32 %v386, %v414
        %s417 = sld [smem:[#allocation2 + $0x24]]
        %v418 = vstv %s417
        %v419 = vmul.f32 %v345, %v418
        %v420 = vmul.f32 %v346, %v418
        %v421 = vadd.f32 %v415, %v419
        %v422 = vadd.f32 %v416, %v420
        %s423 = sld [smem:[#allocation2 + $0x2d]]
        %v424 = vstv %s423
        %v425 = vmul.f32 %v395, %v424
        %v426 = vmul.f32 %v396, %v424
        %v427 = vadd.f32 %v421, %v425
        %v428 = vadd.f32 %v422, %v426
        %v429 = vadd.f32 %v411, %v427
        %v430 = vadd.f32 %v412, %v428
        %431 = vrot.lane.b32.xlu0 %v429, 17
        %v432 = vpop.permute.xlu0 %431
        %433 = vrot.lane.b32.xlu0 %v430, 17
        %v434 = vpop.permute.xlu0 %433
        %v435 = vlaneseq
        %v436 = vand.u32 %v435, 127
        %vm437 = vcmp.lt.s32.totalorder %v436, 17
        %v438 = vsel %vm437, %v432, %v434
        %v439 = vsel %vm437, %v434, %v432
        %v440 = vld [vmem:[%s1] ss:$8 sm:$0x3]
        %v442 = vperm.slane %v440, 0
        %v443 = vperm.slane %v440, 1
        %v446 = vmul.f32 %v439, %v442
        %v447 = vmul.f32 %v438, %v443
        %s448 = sld [smem:[#allocation2 + $0x1]]
        %v449 = vstv %s448
        %v450 = vmul.f32 %v363, %v449
        %v451 = vmul.f32 %v364, %v449
        %s452 = sld [smem:[#allocation2 + $0xa]]
        %v453 = vstv %s452
        %v454 = vmul.f32 %v343, %v453
        %v455 = vmul.f32 %v344, %v453
        %v456 = vadd.f32 %v450, %v454
        %v457 = vadd.f32 %v451, %v455
        %s458 = sld [smem:[#allocation2 + $0x13]]
        %v459 = vstv %s458
        %v460 = vmul.f32 %v375, %v459
        %v461 = vmul.f32 %v376, %v459
        %v462 = vadd.f32 %v456, %v460
        %v463 = vadd.f32 %v457, %v461
        %s464 = sld [smem:[#allocation2 + $0x1c]]
        %v465 = vstv %s464
        %v466 = vmul.f32 %v385, %v465
        %v467 = vmul.f32 %v386, %v465
        %s468 = sld [smem:[#allocation2 + $0x25]]
        %v469 = vstv %s468
        %v470 = vmul.f32 %v345, %v469
        %v471 = vmul.f32 %v346, %v469
        %v472 = vadd.f32 %v466, %v470
        %v473 = vadd.f32 %v467, %v471
        %s474 = sld [smem:[#allocation2 + $0x2e]]
        %v475 = vstv %s474
        %v476 = vmul.f32 %v395, %v475
        %v477 = vmul.f32 %v396, %v475
        %v478 = vadd.f32 %v472, %v476
        %v479 = vadd.f32 %v473, %v477
        %v480 = vadd.f32 %v462, %v478
        %v481 = vadd.f32 %v463, %v479
        %482 = vrot.lane.b32.xlu0 %v480, 16
        %v483 = vpop.permute.xlu0 %482
        %484 = vrot.lane.b32.xlu0 %v481, 16
        %v485 = vpop.permute.xlu0 %484
        %vm486 = vcmp.lt.s32.totalorder %v436, 16
        %v487 = vsel %vm486, %v483, %v485
        %v488 = vsel %vm486, %v485, %v483
        %s489 = scalar_lea.vmem %s1, 1
        %v490 = vld [vmem:[%s489] ss:$8 sm:$0x3]
        %v492 = vperm.slane %v490, 0
        %v493 = vperm.slane %v490, 1
        %v496 = vmul.f32 %v488, %v492
        %v497 = vmul.f32 %v487, %v493
        %v498 = vadd.f32 %v446, %v496
        %v499 = vadd.f32 %v447, %v497
        %s500 = sld [smem:[#allocation2 + $0x2]]
        %v501 = vstv %s500
        %v502 = vmul.f32 %v363, %v501
        %v503 = vmul.f32 %v364, %v501
        %s504 = sld [smem:[#allocation2 + $0xb]]
        %v505 = vstv %s504
        %v506 = vmul.f32 %v343, %v505
        %v507 = vmul.f32 %v344, %v505
        %v508 = vadd.f32 %v502, %v506
        %v509 = vadd.f32 %v503, %v507
        %s510 = sld [smem:[#allocation2 + $0x14]]
        %v511 = vstv %s510
        %v512 = vmul.f32 %v375, %v511
        %v513 = vmul.f32 %v376, %v511
        %v514 = vadd.f32 %v508, %v512
        %v515 = vadd.f32 %v509, %v513
        %s516 = sld [smem:[#allocation2 + $0x1d]]
        %v517 = vstv %s516
        %v518 = vmul.f32 %v385, %v517
        %v519 = vmul.f32 %v386, %v517
        %s520 = sld [smem:[#allocation2 + $0x26]]
        %v521 = vstv %s520
        %v522 = vmul.f32 %v345, %v521
        %v523 = vmul.f32 %v346, %v521
        %v524 = vadd.f32 %v518, %v522
        %v525 = vadd.f32 %v519, %v523
        %s526 = sld [smem:[#allocation2 + $0x2f]]
        %v527 = vstv %s526
        %v528 = vmul.f32 %v395, %v527
        %v529 = vmul.f32 %v396, %v527
        %v530 = vadd.f32 %v524, %v528
        %v531 = vadd.f32 %v525, %v529
        %v532 = vadd.f32 %v514, %v530
        %v533 = vadd.f32 %v515, %v531
        %534 = vrot.lane.b32.xlu0 %v532, 15
        %v535 = vpop.permute.xlu0 %534
        %536 = vrot.lane.b32.xlu0 %v533, 15
        %v537 = vpop.permute.xlu0 %536
        %vm538 = vcmp.lt.s32.totalorder %v436, 15
        %v539 = vsel %vm538, %v535, %v537
        %v540 = vsel %vm538, %v537, %v535
        %s541 = scalar_lea.vmem %s1, 2
        %v542 = vld [vmem:[%s541] ss:$8 sm:$0x3]
        %v544 = vperm.slane %v542, 0
        %v545 = vperm.slane %v542, 1
        %v548 = vmul.f32 %v540, %v544
        %v549 = vmul.f32 %v539, %v545
        %v550 = vadd.f32 %v498, %v548
        %v551 = vadd.f32 %v499, %v549
        %s552 = sld [smem:[#allocation2 + $0x3]]
        %v553 = vstv %s552
        %v554 = vmul.f32 %v363, %v553
        %v555 = vmul.f32 %v364, %v553
        %s556 = sld [smem:[#allocation2 + $0xc]]
        %v557 = vstv %s556
        %v558 = vmul.f32 %v343, %v557
        %v559 = vmul.f32 %v344, %v557
        %v560 = vadd.f32 %v554, %v558
        %v561 = vadd.f32 %v555, %v559
        %s562 = sld [smem:[#allocation2 + $0x15]]
        %v563 = vstv %s562
        %v564 = vmul.f32 %v375, %v563
        %v565 = vmul.f32 %v376, %v563
        %v566 = vadd.f32 %v560, %v564
        %v567 = vadd.f32 %v561, %v565
        %s568 = sld [smem:[#allocation2 + $0x1e]]
        %v569 = vstv %s568
        %v570 = vmul.f32 %v385, %v569
        %v571 = vmul.f32 %v386, %v569
        %s572 = sld [smem:[#allocation2 + $0x27]]
        %v573 = vstv %s572
        %v574 = vmul.f32 %v345, %v573
        %v575 = vmul.f32 %v346, %v573
        %v576 = vadd.f32 %v570, %v574
        %v577 = vadd.f32 %v571, %v575
        %s578 = sld [smem:[#allocation2 + $0x30]]
        %v579 = vstv %s578
        %v580 = vmul.f32 %v395, %v579
        %v581 = vmul.f32 %v396, %v579
        %v582 = vadd.f32 %v576, %v580
        %v583 = vadd.f32 %v577, %v581
        %v584 = vadd.f32 %v566, %v582
        %v585 = vadd.f32 %v567, %v583
        %586 = vrot.lane.b32.xlu0 %v584, 1
        %v587 = vpop.permute.xlu0 %586
        %588 = vrot.lane.b32.xlu0 %v585, 1
        %v589 = vpop.permute.xlu0 %588
        %vm590 = vcmp.lt.s32.totalorder %v436, 1
        %v591 = vsel %vm590, %v587, %v589
        %v592 = vsel %vm590, %v589, %v587
        %s593 = scalar_lea.vmem %s1, 3
        %v594 = vld [vmem:[%s593] ss:$8 sm:$0x3]
        %v596 = vperm.slane %v594, 0
        %v597 = vperm.slane %v594, 1
        %v600 = vmul.f32 %v592, %v596
        %v601 = vmul.f32 %v591, %v597
        %s602 = sld [smem:[#allocation2 + $0x4]]
        %v603 = vstv %s602
        %v604 = vmul.f32 %v363, %v603
        %v605 = vmul.f32 %v364, %v603
        %s606 = sld [smem:[#allocation2 + $0xd]]
        %v607 = vstv %s606
        %v608 = vmul.f32 %v343, %v607
        %v609 = vmul.f32 %v344, %v607
        %v610 = vadd.f32 %v604, %v608
        %v611 = vadd.f32 %v605, %v609
        %s612 = sld [smem:[#allocation2 + $0x16]]
        %v613 = vstv %s612
        %v614 = vmul.f32 %v375, %v613
        %v615 = vmul.f32 %v376, %v613
        %v616 = vadd.f32 %v610, %v614
        %v617 = vadd.f32 %v611, %v615
        %s618 = sld [smem:[#allocation2 + $0x1f]]
        %v619 = vstv %s618
        %v620 = vmul.f32 %v385, %v619
        %v621 = vmul.f32 %v386, %v619
        %s622 = sld [smem:[#allocation2 + $0x28]]
        %v623 = vstv %s622
        %v624 = vmul.f32 %v345, %v623
        %v625 = vmul.f32 %v346, %v623
        %v626 = vadd.f32 %v620, %v624
        %v627 = vadd.f32 %v621, %v625
        %s628 = sld [smem:[#allocation2 + $0x31]]
        %v629 = vstv %s628
        %v630 = vmul.f32 %v395, %v629
        %v631 = vmul.f32 %v396, %v629
        %v632 = vadd.f32 %v626, %v630
        %v633 = vadd.f32 %v627, %v631
        %v634 = vadd.f32 %v616, %v632
        %v635 = vadd.f32 %v617, %v633
        %v636 = vadd.f32 %v600, %v634
        %v637 = vadd.f32 %v601, %v635
        %s638 = sld [smem:[#allocation2 + $0x5]]
        %v639 = vstv %s638
        %v640 = vmul.f32 %v363, %v639
        %v641 = vmul.f32 %v364, %v639
        %s642 = sld [smem:[#allocation2 + $0xe]]
        %v643 = vstv %s642
        %v644 = vmul.f32 %v343, %v643
        %v645 = vmul.f32 %v344, %v643
        %v646 = vadd.f32 %v640, %v644
        %v647 = vadd.f32 %v641, %v645
        %s648 = sld [smem:[#allocation2 + $0x17]]
        %v649 = vstv %s648
        %v650 = vmul.f32 %v375, %v649
        %v651 = vmul.f32 %v376, %v649
        %v652 = vadd.f32 %v646, %v650
        %v653 = vadd.f32 %v647, %v651
        %s654 = sld [smem:[#allocation2 + $0x20]]
        %v655 = vstv %s654
        %v656 = vmul.f32 %v385, %v655
        %v657 = vmul.f32 %v386, %v655
        %s658 = sld [smem:[#allocation2 + $0x29]]
        %v659 = vstv %s658
        %v660 = vmul.f32 %v345, %v659
        %v661 = vmul.f32 %v346, %v659
        %v662 = vadd.f32 %v656, %v660
        %v663 = vadd.f32 %v657, %v661
        %s664 = sld [smem:[#allocation2 + $0x32]]
        %v665 = vstv %s664
        %v666 = vmul.f32 %v395, %v665
        %v667 = vmul.f32 %v396, %v665
        %v668 = vadd.f32 %v662, %v666
        %v669 = vadd.f32 %v663, %v667
        %v670 = vadd.f32 %v652, %v668
        %v671 = vadd.f32 %v653, %v669
        %672 = vrot.lane.b32.xlu0 %v670, 127
        %v673 = vpop.permute.xlu0 %672
        %674 = vrot.lane.b32.xlu0 %v671, 127
        %v675 = vpop.permute.xlu0 %674
        %vm676 = vcmp.lt.s32.totalorder %v436, 127
        %v677 = vsel %vm676, %v673, %v675
        %v678 = vsel %vm676, %v675, %v673
        %s679 = scalar_lea.vmem %s1, 5
        %v680 = vld [vmem:[%s679] ss:$8 sm:$0x3]
        %v682 = vperm.slane %v680, 0
        %v683 = vperm.slane %v680, 1
        %v686 = vmul.f32 %v677, %v682
        %v687 = vmul.f32 %v678, %v683
        %v688 = vadd.f32 %v636, %v686
        %v689 = vadd.f32 %v637, %v687
        %s690 = sld [smem:[#allocation2 + $0x6]]
        %v691 = vstv %s690
        %v692 = vmul.f32 %v363, %v691
        %v693 = vmul.f32 %v364, %v691
        %s694 = sld [smem:[#allocation2 + $0xf]]
        %v695 = vstv %s694
        %v696 = vmul.f32 %v343, %v695
        %v697 = vmul.f32 %v344, %v695
        %v698 = vadd.f32 %v692, %v696
        %v699 = vadd.f32 %v693, %v697
        %s700 = sld [smem:[#allocation2 + $0x18]]
        %v701 = vstv %s700
        %v702 = vmul.f32 %v375, %v701
        %v703 = vmul.f32 %v376, %v701
        %v704 = vadd.f32 %v698, %v702
        %v705 = vadd.f32 %v699, %v703
        %s706 = sld [smem:[#allocation2 + $0x21]]
        %v707 = vstv %s706
        %v708 = vmul.f32 %v385, %v707
        %v709 = vmul.f32 %v386, %v707
        %s710 = sld [smem:[#allocation2 + $0x2a]]
        %v711 = vstv %s710
        %v712 = vmul.f32 %v345, %v711
        %v713 = vmul.f32 %v346, %v711
        %v714 = vadd.f32 %v708, %v712
        %v715 = vadd.f32 %v709, %v713
        %s716 = sld [smem:[#allocation2 + $0x33]]
        %v717 = vstv %s716
        %v718 = vmul.f32 %v395, %v717
        %v719 = vmul.f32 %v396, %v717
        %v720 = vadd.f32 %v714, %v718
        %v721 = vadd.f32 %v715, %v719
        %v722 = vadd.f32 %v704, %v720
        %v723 = vadd.f32 %v705, %v721
        %724 = vrot.lane.b32.xlu0 %v722, 113
        %v725 = vpop.permute.xlu0 %724
        %726 = vrot.lane.b32.xlu0 %v723, 113
        %v727 = vpop.permute.xlu0 %726
        %vm728 = vcmp.lt.s32.totalorder %v436, 113
        %v729 = vsel %vm728, %v725, %v727
        %v730 = vsel %vm728, %v727, %v725
        %s731 = scalar_lea.vmem %s1, 6
        %v732 = vld [vmem:[%s731] ss:$8 sm:$0x3]
        %v734 = vperm.slane %v732, 0
        %v735 = vperm.slane %v732, 1
        %v738 = vmul.f32 %v729, %v734
        %v739 = vmul.f32 %v730, %v735
        %s740 = sld [smem:[#allocation2 + $0x7]]
        %v741 = vstv %s740
        %v742 = vmul.f32 %v363, %v741
        %v743 = vmul.f32 %v364, %v741
        %s744 = sld [smem:[#allocation2 + $0x10]]
        %v745 = vstv %s744
        %v746 = vmul.f32 %v343, %v745
        %v747 = vmul.f32 %v344, %v745
        %v748 = vadd.f32 %v742, %v746
        %v749 = vadd.f32 %v743, %v747
        %s750 = sld [smem:[#allocation2 + $0x19]]
        %v751 = vstv %s750
        %v752 = vmul.f32 %v375, %v751
        %v753 = vmul.f32 %v376, %v751
        %v754 = vadd.f32 %v748, %v752
        %v755 = vadd.f32 %v749, %v753
        %s756 = sld [smem:[#allocation2 + $0x22]]
        %v757 = vstv %s756
        %v758 = vmul.f32 %v385, %v757
        %v759 = vmul.f32 %v386, %v757
        %s760 = sld [smem:[#allocation2 + $0x2b]]
        %v761 = vstv %s760
        %v762 = vmul.f32 %v345, %v761
        %v763 = vmul.f32 %v346, %v761
        %v764 = vadd.f32 %v758, %v762
        %v765 = vadd.f32 %v759, %v763
        %s766 = sld [smem:[#allocation2 + $0x34]]
        %v767 = vstv %s766
        %v768 = vmul.f32 %v395, %v767
        %v769 = vmul.f32 %v396, %v767
        %v770 = vadd.f32 %v764, %v768
        %v771 = vadd.f32 %v765, %v769
        %v772 = vadd.f32 %v754, %v770
        %v773 = vadd.f32 %v755, %v771
        %774 = vrot.lane.b32.xlu0 %v772, 112
        %v775 = vpop.permute.xlu0 %774
        %776 = vrot.lane.b32.xlu0 %v773, 112
        %v777 = vpop.permute.xlu0 %776
        %vm778 = vcmp.lt.s32.totalorder %v436, 112
        %v779 = vsel %vm778, %v775, %v777
        %v780 = vsel %vm778, %v777, %v775
        %s781 = scalar_lea.vmem %s1, 7
        %v782 = vld [vmem:[%s781] ss:$8 sm:$0x3]
        %v784 = vperm.slane %v782, 0
        %v785 = vperm.slane %v782, 1
        %v788 = vmul.f32 %v779, %v784
        %v789 = vmul.f32 %v780, %v785
        %v790 = vadd.f32 %v738, %v788
        %v791 = vadd.f32 %v739, %v789
        %s792 = sld [smem:[#allocation2 + $0x8]]
        %v793 = vstv %s792
        %v794 = vmul.f32 %v363, %v793
        %v795 = vmul.f32 %v364, %v793
        %s796 = sld [smem:[#allocation2 + $0x11]]
        %v797 = vstv %s796
        %v798 = vmul.f32 %v343, %v797
        %v799 = vmul.f32 %v344, %v797
        %v800 = vadd.f32 %v794, %v798
        %v801 = vadd.f32 %v795, %v799
        %s802 = sld [smem:[#allocation2 + $0x1a]]
        %v803 = vstv %s802
        %v804 = vmul.f32 %v375, %v803
        %v805 = vmul.f32 %v376, %v803
        %v806 = vadd.f32 %v800, %v804
        %v807 = vadd.f32 %v801, %v805
        %s808 = sld [smem:[#allocation2 + $0x23]]
        %v809 = vstv %s808
        %v810 = vmul.f32 %v385, %v809
        %v811 = vmul.f32 %v386, %v809
        %s812 = sld [smem:[#allocation2 + $0x2c]]
        %v813 = vstv %s812
        %v814 = vmul.f32 %v345, %v813
        %v815 = vmul.f32 %v346, %v813
        %v816 = vadd.f32 %v810, %v814
        %v817 = vadd.f32 %v811, %v815
        %s818 = sld [smem:[#allocation2 + $0x35]]
        %v819 = vstv %s818
        %v820 = vmul.f32 %v395, %v819
        %v821 = vmul.f32 %v396, %v819
        %v822 = vadd.f32 %v816, %v820
        %v823 = vadd.f32 %v817, %v821
        %v824 = vadd.f32 %v806, %v822
        %v825 = vadd.f32 %v807, %v823
        %826 = vrot.lane.b32.xlu0 %v824, 111
        %v827 = vpop.permute.xlu0 %826
        %828 = vrot.lane.b32.xlu0 %v825, 111
        %v829 = vpop.permute.xlu0 %828
        %vm830 = vcmp.lt.s32.totalorder %v436, 111
        %v831 = vsel %vm830, %v827, %v829
        %v832 = vsel %vm830, %v829, %v827
        %s833 = scalar_lea.vmem %s1, 16
        %v834 = vld [vmem:[%s833] ss:$8 sm:$0x3]
        %v836 = vperm.slane %v834, 0
        %v837 = vperm.slane %v834, 1
        %v840 = vmul.f32 %v831, %v836
        %v841 = vmul.f32 %v832, %v837
        %v842 = vadd.f32 %v790, %v840
        %v843 = vadd.f32 %v791, %v841
        %s844 = sld [smem:[#allocation2 + $0x36]]
        %v845 = vadd.f32 %v550, %v688
        %v846 = vadd.f32 %v551, %v689
        %v847 = vstv %s844
        %v848 = vadd.f32 %v842, %v847
        %v849 = vadd.f32 %v843, %v847
        %v850 = vadd.f32 %v845, %v848
        %v851 = vadd.f32 %v846, %v849
        %v852 = vmax.f32 %v850, 0.0
        %v853 = vmax.f32 %v851, 0.0
        %v854 = vxor.u32 %v852, 2147483648
        %v855 = vxor.u32 %v853, 2147483648
        %v856 = vmul.f32 %v854, 1.442695
        %v857 = vpow.pop %v856
        %v858 = vmul.f32 %v855, 1.442695
        %v859 = vpow.pop %v858
        %v860 = vadd.f32 %v857, 1.0
        %v861 = vadd.f32 %v859, 1.0
        %v862 = vrcp.pop %v860
        %v863 = vmul.f32 %v860, %v862
        %v864 = vsub.f32 1.0, %v863
        %v865 = vmul.f32 %v862, %v864
        %v866 = vadd.f32 %v862, %v865
        %vm867 = vweird.f32 %v860
        %vm868 = vweird.f32 %v862
        %vm869 = vmor %vm867, %vm868
        %v870 = vsel %vm869, %v862, %v866
        %v871 = vand.u32 2147483647, %v860
        %vm872 = vcmp.eq.f32.partialorder %v871, 8.507059e+37
        %v873 = vand.u32 %v860, 2147483648
        %v874 = vor.u32 1.1754944e-38, %v873
        %v875 = vsel %vm872, %v874, %v870
        %v876 = vmul.f32 1.0, %v875
        %v877 = vrcp.pop %v861
        %v878 = vmul.f32 %v861, %v877
        %v879 = vsub.f32 1.0, %v878
        %v880 = vmul.f32 %v877, %v879
        %v881 = vadd.f32 %v877, %v880
        %vm882 = vweird.f32 %v861
        %vm883 = vweird.f32 %v877
        %vm884 = vmor %vm882, %vm883
        %v885 = vsel %vm884, %v877, %v881
        %v886 = vand.u32 2147483647, %v861
        %vm887 = vcmp.eq.f32.partialorder %v886, 8.507059e+37
        %v888 = vand.u32 %v861, 2147483648
        %v889 = vor.u32 1.1754944e-38, %v888
        %v890 = vsel %vm887, %v889, %v885
        %v891 = vmul.f32 1.0, %v890
        %892 = vst [vmem:[%s342] sm:$0xff] %v876
        %893 = vst [vmem:[%s342 + $0x8] sm:$0xff] %v891
        %p894 = scmp.lt.s32.totalorder %s21, 1
        %s895 = scalar_select %p894, %s21, 1
        %p896 = scmp.lt.s32.totalorder %s22, 1
        %s897 = scalar_select %p896, %s22, 1
        %s898 = smul.addr %s897, 2
        %s899 = smul.addr %s895, 4
        %s900 = sadd.s32 %s898, %s899
        %s901 = smul.addr %s900, 8
        %s902 = scalar_lea.vmem %s5, %s901
        // Predicated region
        $region45: #{exnet_forward.1} parent=39 // pred_check
          %p903 = pneg %p175
        $region46: #{exnet_forward.1} parent=39 // pred_check_branch
          %905 = sbr.rel (%p903) target = $region48
        $region47: #{exnet_forward.1} parent=39 // pred_region
          _
        $region48: #{exnet_forward.1} parent=39 // pred_fallthru
          _
      $region40: #{exnet_forward.1} parent=5 // pred_fallthru
        _
      %p906 = scmp.le.s32.totalorder 2, %s12
      // Predicated region
      $region49: #{exnet_forward.1} parent=5 // pred_check
        %p907 = pneg %p906
      $region50: #{exnet_forward.1} parent=5 // pred_check_branch
        %909 = sbr.rel (%p907) target = $region52
      $region51: #{exnet_forward.1} parent=5 // pred_region
        %s910 = ssub.s32 %s12, 2
        // Predicated region
        $region53: #{exnet_forward.1} parent=51 // pred_check
          %p911 = pneg %p181
        $region54: #{exnet_forward.1} parent=51 // pred_check_branch
          %913 = sbr.rel (%p911) target = $region56
        $region55: #{exnet_forward.1} parent=51 // pred_region
          %p914 = scmp.lt.s32.totalorder %s23, 1
          %s915 = scalar_select %p914, %s23, 1
          %p916 = scmp.lt.s32.totalorder %s24, 1
          %s917 = scalar_select %p916, %s24, 1
          %s918 = smul.addr %s917, 2
          %s919 = smul.addr %s915, 4
          %s920 = sadd.s32 %s918, %s919
          %s921 = smul.addr %s920, 8
          %s922 = scalar_lea.vmem %s5, %s921
        $region56: #{exnet_forward.1} parent=51 // pred_fallthru
          _
      $region52: #{exnet_forward.1} parent=5 // pred_fallthru
        _
    $region6: #{exnet_forward.1} parent=1 // loop_footer
      %s16 = sadd.s32 1, %s12
    $region7: #{exnet_forward.1} parent=1 // loop_footer_branch
      %11 = sbr.rel target = $region3
    $region8: #{exnet_forward.1} parent=1 // loop_exit
      _
    %923 = vsyncpa [#allocation3], 1
    %s924 = scalar_lea.sflag [#allocation3], 1
    %925 = vsyncpa %s924, 1

</llo_original>
